<compile_context>
chip_gen: v5e
topology: v5e:2x2
jax: 0.10.0
libtpu: 0.0.40
codegen_flags: <defaults>
</compile_context>

<pallas_src>
import functools

import jax
import jax.numpy as jnp
from jax.experimental import pallas as pl
from jax.experimental.pallas import tpu as pltpu

_LANES = 128
_MAX_BLOCK_ROWS = 512   # 512x128 f32 = 256 KiB per input per pipeline buffer
_NUM_CORES = 2          # reduction shards for the "parallel" core axis (v7x)


def _abs_sum_kernel(gt_ref, pr_ref, out_ref, acc_ref, *,
                    block_rows, blocks_per_core, valid_rows, needs_mask):
    """Accumulate sum(|gt - pred|) into a vreg-shaped (8, 128) partial-sum slab."""
    c = pl.program_id(0)   # core-split axis ("parallel")
    i = pl.program_id(1)   # row-block axis ("arbitrary", the reduction axis)

    @pl.when(i == 0)
    def _():
        acc_ref[...] = jnp.zeros_like(acc_ref)

    # Cast inside the kernel; inputs travel HBM->VMEM in their original dtype.
    d = jnp.abs(gt_ref[...].astype(jnp.float32) - pr_ref[...].astype(jnp.float32))

    if needs_mask:
        # Mask rows past the logical array: covers the partial last block
        # (unspecified OOB data) and fully-redundant clamped blocks.
        lb = c * blocks_per_core + i  # unclamped linear block id
        row_ids = jax.lax.broadcasted_iota(jnp.int32, d.shape, 0) + lb * block_rows
        d = jnp.where(row_ids < valid_rows, d, 0.0)

    # Fold (block_rows, 128) into the (8, 128) accumulator: pure VPU adds,
    # no cross-lane reduction and no sub-vreg stores in the steady state.
    acc_ref[...] += jnp.sum(d.reshape(block_rows // 8, 8, _LANES), axis=0)

    @pl.when(i == pl.num_programs(1) - 1)
    def _():
        out_ref[...] = acc_ref[...]   # one unmasked, lane-dense store per core


@functools.partial(jax.jit, static_argnames=("alpha",))
def smooth_l1_loss(gt_locs, predicted_locs, alpha=0.01):
    # torch: gt_locs.view(-1, 4); predicted_locs.view(-1, 4)  (.contigious() is
    # a no-op typo in the original module; a flat contiguous view is used here).
    gt = gt_locs.reshape(-1)
    pr = predicted_locs.reshape(-1)
    n_elems = gt.size  # mean denominator (static under jit)

    # Pad (in the ORIGINAL dtype, no upcast) only to the next multiple of 128
    # so the flat data can be viewed as a lane-dense (rows, 128) slab.  When
    # n_elems % 128 == 0 this is a free bitcast-style reshape (no copy).
    pad = (-n_elems) % _LANES
    if pad:
        gt = jnp.pad(gt, (0, pad))
        pr = jnp.pad(pr, (0, pad))
    rows = (n_elems + pad) // _LANES
    gt2d = gt.reshape(rows, _LANES)
    pr2d = pr.reshape(rows, _LANES)

    # Block sizing: as large as possible (sublane-aligned), capped for tiny inputs.
    block_rows = min(_MAX_BLOCK_ROWS, ((rows + 7) // 8) * 8)
    num_row_blocks = pl.cdiv(rows, block_rows)
    blocks_per_core = pl.cdiv(num_row_blocks, _NUM_CORES)
    needs_mask = (_NUM_CORES * blocks_per_core * block_rows) != rows

    def in_map(c, i):
        # Clamp so the pipeline never requests a fully out-of-bounds block;
        # redundant clamped blocks are zeroed by the in-kernel row mask.
        return (jnp.minimum(c * blocks_per_core + i, num_row_blocks - 1), 0)

    kernel = functools.partial(
        _abs_sum_kernel,
        block_rows=block_rows,
        blocks_per_core=blocks_per_core,
        valid_rows=rows,
        needs_mask=needs_mask,
    )

    partials = pl.pallas_call(
        kernel,
        out_shape=jax.ShapeDtypeStruct((_NUM_CORES * 8, _LANES), jnp.float32),
        grid=(_NUM_CORES, blocks_per_core),
        in_specs=[
            pl.BlockSpec((block_rows, _LANES), in_map),
            pl.BlockSpec((block_rows, _LANES), in_map),
        ],
        out_specs=pl.BlockSpec((8, _LANES), lambda c, i: (c, 0)),
        scratch_shapes=[pltpu.VMEM((8, _LANES), jnp.float32)],
        compiler_params=pltpu.CompilerParams(
            dimension_semantics=("parallel", "arbitrary"),
        ),
    )(gt2d, pr2d)

    mean_abs_diff = jnp.sum(partials) / jnp.float32(n_elems)

    # smooth_l1 = mean*(mean>=alpha) + mean**2/alpha*(mean<alpha); .sum() of a
    # scalar is the scalar itself.
    ge = (mean_abs_diff >= alpha).astype(jnp.float32)
    lt = (mean_abs_diff < alpha).astype(jnp.float32)
    return mean_abs_diff * ge + (mean_abs_diff ** 2) / alpha * lt


def _reference(gt_locs, predicted_locs, alpha=0.01):
    gt = gt_locs.reshape(-1, 4).astype(jnp.float32)
    pr = predicted_locs.reshape(-1, 4).astype(jnp.float32)
    m = jnp.mean(jnp.abs(gt - pr))
    return jnp.where(m >= alpha, m, m ** 2 / alpha)


if __name__ == "__main__":
    key = jax.random.PRNGKey(0)

    # Small case consistent with .view(-1, 4): (batch=2, n_priors=8, 4).
    k1, k2, k3, k4 = jax.random.split(key, 4)
    gt_small = jax.random.normal(k1, (2, 8, 4), dtype=jnp.float32)
    pr_small = jax.random.normal(k2, (2, 8, 4), dtype=jnp.float32)
    out_small = jax.block_until_ready(smooth_l1_loss(gt_small, pr_small, alpha=0.01))
    ref_small = _reference(gt_small, pr_small, alpha=0.01)
    assert jnp.allclose(out_small, ref_small, rtol=1e-5, atol=1e-6), (out_small, ref_small)

    # A second (still small) case that exercises multi-block grid, ragged tail
    # masking and the clamped-duplicate-block path.
    gt_big = jax.random.normal(k3, (4, 8732, 4), dtype=jnp.float32)
    pr_big = jax.random.normal(k4, (4, 8732, 4), dtype=jnp.float32)
    out_big = jax.block_until_ready(smooth_l1_loss(gt_big, pr_big, alpha=0.01))
    ref_big = _reference(gt_big, pr_big, alpha=0.01)
    assert jnp.allclose(out_big, ref_big, rtol=1e-4, atol=1e-6), (out_big, ref_big)

    print("KERNEL_OK")
</pallas_src>

<mosaic_0001>
module attributes {stable_mosaic.version = 11 : i64} {
  func.func @_abs_sum_kernel(%arg0: i32, %arg1: i32, %arg2: memref<8x128xf32, #tpu.memory_space<vmem>>, %arg3: memref<8x128xf32, #tpu.memory_space<vmem>>, %arg4: memref<8x128xf32, #tpu.memory_space<vmem>>, %arg5: memref<8x128xf32, #tpu.memory_space<vmem>>) attributes {dimension_semantics = [#tpu.dimension_semantics<parallel>, #tpu.dimension_semantics<arbitrary>], iteration_bounds = array<i64: 2, 1>, scalar_prefetch = 0 : i64, scratch_operands = 1 : i64, tpu.core_type = #tpu.core_type<tc>, window_params = [{transform_indices = @transform_0, window_bounds = array<i64: 8, 128>}, {transform_indices = @transform_1, window_bounds = array<i64: 8, 128>}, {transform_indices = @transform_2, window_bounds = array<i64: 8, 128>}]} {
    %c0_i32 = arith.constant 0 : i32
    %0 = arith.cmpi eq, %arg1, %c0_i32 : i32
    %1 = arith.extui %0 : i1 to i32
    %c0_i32_0 = arith.constant 0 : i32
    %2 = arith.cmpi ne, %1, %c0_i32_0 : i32
    scf.if %2 {
      %cst_12 = arith.constant 0.000000e+00 : f32
      %25 = vector.broadcast %cst_12 : f32 to vector<8x128xf32>
      %c0_13 = arith.constant 0 : index
      %c0_14 = arith.constant 0 : index
      %26 = vector.load %arg5[%c0_13, %c0_14] : memref<8x128xf32, #tpu.memory_space<vmem>>, vector<8x128xf32>
      tpu.vector_store %arg5[%c0_13, %c0_14], %25 {strides = array<i32>} : memref<8x128xf32, #tpu.memory_space<vmem>>, vector<8x128xf32>,
    } else {
    }
    %c0 = arith.constant 0 : index
    %c0_1 = arith.constant 0 : index
    %3 = vector.load %arg2[%c0, %c0_1] : memref<8x128xf32, #tpu.memory_space<vmem>>, vector<8x128xf32>
    %c0_2 = arith.constant 0 : index
    %c0_3 = arith.constant 0 : index
    %4 = vector.load %arg3[%c0_2, %c0_3] : memref<8x128xf32, #tpu.memory_space<vmem>>, vector<8x128xf32>
    %5 = arith.subf %3, %4 : vector<8x128xf32>
    %6 = math.absf %5 : vector<8x128xf32>
    %c1_i32 = arith.constant 1 : i32
    %7 = arith.muli %arg0, %c1_i32 : i32
    %8 = arith.addi %7, %arg1 : i32
    %9 = tpu.iota {dimensions = array<i32: 0>} : vector<8x128xi32>
    %c8_i32 = arith.constant 8 : i32
    %10 = arith.muli %8, %c8_i32 : i32
    %11 = vector.broadcast %10 : i32 to vector<8x128xi32>
    %12 = arith.addi %9, %11 : vector<8x128xi32>
    %c1_i32_4 = arith.constant 1 : i32
    %13 = vector.broadcast %c1_i32_4 : i32 to vector<8x128xi32>
    %14 = arith.cmpi slt, %12, %13 : vector<8x128xi32>
    %cst = arith.constant 0.000000e+00 : f32
    %15 = vector.broadcast %cst : f32 to vector<8x128xf32>
    %16 = arith.select %14, %6, %15 : vector<8x128xi1>, vector<8x128xf32>
    %c0_5 = arith.constant 0 : index
    %c0_6 = arith.constant 0 : index
    %17 = vector.load %arg5[%c0_5, %c0_6] : memref<8x128xf32, #tpu.memory_space<vmem>>, vector<8x128xf32>
    %18 = vector.shape_cast %16 : vector<8x128xf32> to vector<1x8x128xf32>
    %cst_7 = arith.constant dense<0.000000e+00> : vector<8x128xf32>
    %19 = vector.multi_reduction <add>, %18, %cst_7 [0] : vector<1x8x128xf32> to vector<8x128xf32>
    %20 = arith.addf %17, %19 : vector<8x128xf32>
    %c0_8 = arith.constant 0 : index
    %c0_9 = arith.constant 0 : index
    %21 = vector.load %arg5[%c0_8, %c0_9] : memref<8x128xf32, #tpu.memory_space<vmem>>, vector<8x128xf32>
    tpu.vector_store %arg5[%c0_8, %c0_9], %20 {strides = array<i32>} : memref<8x128xf32, #tpu.memory_space<vmem>>, vector<8x128xf32>,
    %c0_i32_10 = arith.constant 0 : i32
    %22 = arith.cmpi eq, %arg1, %c0_i32_10 : i32
    %23 = arith.extui %22 : i1 to i32
    %c0_i32_11 = arith.constant 0 : i32
    %24 = arith.cmpi ne, %23, %c0_i32_11 : i32
    scf.if %24 {
      %c0_12 = arith.constant 0 : index
      %c0_13 = arith.constant 0 : index
      %25 = vector.load %arg5[%c0_12, %c0_13] : memref<8x128xf32, #tpu.memory_space<vmem>>, vector<8x128xf32>
      %c0_14 = arith.constant 0 : index
      %c0_15 = arith.constant 0 : index
      %26 = vector.load %arg4[%c0_14, %c0_15] : memref<8x128xf32, #tpu.memory_space<vmem>>, vector<8x128xf32>
      tpu.vector_store %arg4[%c0_14, %c0_15], %25 {strides = array<i32>} : memref<8x128xf32, #tpu.memory_space<vmem>>, vector<8x128xf32>,
    } else {
    }
    return
  }
  func.func @transform_0(%arg0: i32, %arg1: i32) -> (i32, i32) {
    %c1_i32 = arith.constant 1 : i32
    %0 = arith.muli %arg0, %c1_i32 : i32
    %1 = arith.addi %0, %arg1 : i32
    %c0_i32 = arith.constant 0 : i32
    %2 = arith.minsi %1, %c0_i32 : i32
    %c0_i32_0 = arith.constant 0 : i32
    %c0_i32_1 = arith.constant 0 : i32
    return %2, %c0_i32_0 : i32, i32
  }
  func.func @transform_1(%arg0: i32, %arg1: i32) -> (i32, i32) {
    %c1_i32 = arith.constant 1 : i32
    %0 = arith.muli %arg0, %c1_i32 : i32
    %1 = arith.addi %0, %arg1 : i32
    %c0_i32 = arith.constant 0 : i32
    %2 = arith.minsi %1, %c0_i32 : i32
    %c0_i32_0 = arith.constant 0 : i32
    %c0_i32_1 = arith.constant 0 : i32
    return %2, %c0_i32_0 : i32, i32
  }
  func.func @transform_2(%arg0: i32, %arg1: i32) -> (i32, i32) {
    %c0_i32 = arith.constant 0 : i32
    %c0_i32_0 = arith.constant 0 : i32
    return %arg0, %c0_i32 : i32, i32
  }
}

</mosaic_0001>

<llo_original>
// kernel: smooth_l1_loss.1
$region0: #{smooth_l1_loss.1}
  #allocation0 [shape = 'u32[]', space=smem, size = 0x4, offset = 0x4, fixed_abs, tag = 'smem constant byte address 0x4 - core index']
  #allocation1 [shape = 'u32[72,128]{1,0:T(1,128)}', space=vmem, size = 0x9000, scoped, tag = 'internal scratch']
  #allocation2 [shape = 'f32[8,128]{1,0:T(8,128)}', space=vmem, size = 0x1000, scoped, tag = 'scratch operand']
  %s0 = inlined_call_operand.vmem [shape: f32[1,128], index: 0, kind: input, shape index: {}]
  %s1 = inlined_call_operand.vmem [shape: f32[1,128], index: 1, kind: input, shape index: {}]
  %s2 = inlined_call_operand.vmem [shape: f32[16,128], index: 2, kind: output, shape index: {}]
  %s3 = sld [smem:[#allocation0]]
  $region49: #{smooth_l1_loss.1} parent=0
    _
  %s5 = ssub.s32 1, %s3
  %s6 = scalar_select 0, %s5, %s3
  loop: start=0, step=1, limit=4
  $region2: #{smooth_l1_loss.1} parent=0 // loop_pre_header
    _
  $region3: #{smooth_l1_loss.1} parent=0 // loop_header
    %s8 = sphi 0, %s12
    %p9 = scmp.ge.s32.totalorder %s8, 4
    %s15 = sphi 0, %s27
    %s16 = sphi 0, %s23
    %s17 = sphi 0, %s15
    %s18 = sphi 0, %s16
    %s19 = sphi 0, %s17
    %s20 = sphi 0, %s18
    %s36 = sphi 0, %s38
    %s39 = sphi 0, %s36
    %s40 = sphi 0, %s39
    %s56 = sphi 0, %s40
    %s68 = sphi 0, %s70
    %s71 = sphi 0, %s68
    %s72 = sphi 0, %s71
    %s88 = sphi 0, %s72
    %s94 = sphi 0, %s96
    %s97 = sphi 0, %s94
    %s98 = sphi 0, %s97
    %s114 = sphi 0, %s98
  $region4: #{smooth_l1_loss.1} parent=0 // loop_header_branch
    %11 = sbr.rel (%p9) target = $region8
  $region5: #{smooth_l1_loss.1} parent=0 // loop_body
    %s13 = ssub.s32 %s8, 1
    %s14 = ssub.s32 %s8, 2
    %s21 = sadd.s32 1, %s16
    %p22 = scmp.ge.s32.totalorder %s21, 1
    %s23 = scalar_select %p22, 0, %s21
    %s24 = sadd.s32 1, %s15
    %s25 = scalar_select %p22, %s24, %s15
    %p26 = scmp.ge.s32.totalorder %s25, 2
    %s27 = scalar_select %p26, 0, %s25
    %s28 = sadd.s32 %s15, %s16
    %p29 = scmp.lt.s32.totalorder %s28, 0
    %s30 = scalar_select %p29, %s28, 0
    %s31 = sadd.s32 %s27, %s23
    %p32 = scmp.lt.s32.totalorder %s31, 0
    %s33 = scalar_select %p32, %s31, 0
    %s34 = ssub.s32 %s30, %s33
    %p35 = scmp.eq.s32.totalorder %s34, 0
    %s37 = sadd.s32 %s36, 1
    %s38 = scalar_select %p35, %s36, %s37
    %p41 = pneg %p35
    %p42 = scmp.eq.s32.totalorder %s8, 1
    %p43 = por %p41, %p42
    %p44 = scmp.ne.s32.totalorder %s36, %s39
    %p45 = scmp.eq.s32.totalorder %s8, 0
    %p46 = por %p44, %p45
    %p47 = scmp.ne.s32.totalorder %s36, %s39
    %p48 = scmp.eq.s32.totalorder %s13, 1
    %p49 = por %p47, %p48
    %p50 = scmp.ne.s32.totalorder %s39, %s40
    %p51 = scmp.eq.s32.totalorder %s13, 0
    %p52 = por %p50, %p51
    %p53 = scmp.ne.s32.totalorder %s39, %s40
    %p54 = scmp.eq.s32.totalorder %s14, 1
    %p55 = por %p53, %p54
    %p57 = scmp.ne.s32.totalorder %s40, %s56
    %p58 = scmp.eq.s32.totalorder %s14, 0
    %p59 = por %p57, %p58
    %s60 = sadd.s32 %s15, %s16
    %p61 = scmp.lt.s32.totalorder %s60, 0
    %s62 = scalar_select %p61, %s60, 0
    %s63 = sadd.s32 %s27, %s23
    %p64 = scmp.lt.s32.totalorder %s63, 0
    %s65 = scalar_select %p64, %s63, 0
    %s66 = ssub.s32 %s62, %s65
    %p67 = scmp.eq.s32.totalorder %s66, 0
    %s69 = sadd.s32 %s68, 1
    %s70 = scalar_select %p67, %s68, %s69
    %p73 = pneg %p67
    %p74 = scmp.eq.s32.totalorder %s8, 1
    %p75 = por %p73, %p74
    %p76 = scmp.ne.s32.totalorder %s68, %s71
    %p77 = scmp.eq.s32.totalorder %s8, 0
    %p78 = por %p76, %p77
    %p79 = scmp.ne.s32.totalorder %s68, %s71
    %p80 = scmp.eq.s32.totalorder %s13, 1
    %p81 = por %p79, %p80
    %p82 = scmp.ne.s32.totalorder %s71, %s72
    %p83 = scmp.eq.s32.totalorder %s13, 0
    %p84 = por %p82, %p83
    %p85 = scmp.ne.s32.totalorder %s71, %s72
    %p86 = scmp.eq.s32.totalorder %s14, 1
    %p87 = por %p85, %p86
    %p89 = scmp.ne.s32.totalorder %s72, %s88
    %p90 = scmp.eq.s32.totalorder %s14, 0
    %p91 = por %p89, %p90
    %s92 = ssub.s32 %s15, %s27
    %p93 = scmp.eq.s32.totalorder %s92, 0
    %s95 = sadd.s32 %s94, 1
    %s96 = scalar_select %p93, %s94, %s95
    %p99 = pneg %p93
    %p100 = scmp.eq.s32.totalorder %s8, 1
    %p101 = por %p99, %p100
    %p102 = scmp.ne.s32.totalorder %s94, %s97
    %p103 = scmp.eq.s32.totalorder %s8, 0
    %p104 = por %p102, %p103
    %p105 = scmp.ne.s32.totalorder %s94, %s97
    %p106 = scmp.eq.s32.totalorder %s13, 1
    %p107 = por %p105, %p106
    %p108 = scmp.ne.s32.totalorder %s97, %s98
    %p109 = scmp.eq.s32.totalorder %s13, 0
    %p110 = por %p108, %p109
    %p111 = scmp.ne.s32.totalorder %s97, %s98
    %p112 = scmp.eq.s32.totalorder %s14, 1
    %p113 = por %p111, %p112
    %p115 = scmp.ne.s32.totalorder %s98, %s114
    %p116 = scmp.eq.s32.totalorder %s14, 0
    %p117 = por %p115, %p116
    %p118 = scmp.le.s32.totalorder 1, %s8
    %p119 = scmp.lt.s32.totalorder %s8, 3
    %p120 = pnand %p118, %p119
    %p121 = pneg %p120
    // Predicated region
    $region9: #{smooth_l1_loss.1} parent=5 // pred_check
      _
    $region10: #{smooth_l1_loss.1} parent=5 // pred_check_branch
      %123 = sbr.rel (%p120) target = $region12
    $region11: #{smooth_l1_loss.1} parent=5 // pred_region
      %s124 = ssub.s32 %s8, 1
    $region12: #{smooth_l1_loss.1} parent=5 // pred_fallthru
      _
    %p125 = scmp.lt.s32.totalorder %s8, 2
    // Predicated region
    $region13: #{smooth_l1_loss.1} parent=5 // pred_check
      %p126 = pneg %p125
    $region14: #{smooth_l1_loss.1} parent=5 // pred_check_branch
      %128 = sbr.rel (%p126) target = $region16
    $region15: #{smooth_l1_loss.1} parent=5 // pred_region
      // Predicated region
      $region17: #{smooth_l1_loss.1} parent=15 // pred_check
        %p129 = pneg %p46
      $region18: #{smooth_l1_loss.1} parent=15 // pred_check_branch
        %131 = sbr.rel (%p129) target = $region20
      $region19: #{smooth_l1_loss.1} parent=15 // pred_region
        %s132 = sadd.s32 %s15, %s16
        %p133 = scmp.lt.s32.totalorder %s132, 0
        %s134 = scalar_select %p133, %s132, 0
        %s135 = smul.u32 8, %s134
        %s136 = ssub.s32 1, %s135
        %p137 = scmp.lt.s32.totalorder %s135, 0
        %s138 = scalar_select %p137, %s135, 0
        %s139 = scalar_lea.vmem %s0, %s138
        %s140 = sadd.s32 %s15, %s16
        %p141 = scmp.lt.s32.totalorder %s140, 0
        %s142 = scalar_select %p141, %s140, 0
        %s143 = smul.u32 8, %s142
        %s144 = ssub.s32 1, %s143
      $region20: #{smooth_l1_loss.1} parent=15 // pred_fallthru
        _
      // Predicated region
      $region21: #{smooth_l1_loss.1} parent=15 // pred_check
        %p145 = pneg %p78
      $region22: #{smooth_l1_loss.1} parent=15 // pred_check_branch
        %147 = sbr.rel (%p145) target = $region24
      $region23: #{smooth_l1_loss.1} parent=15 // pred_region
        %s148 = sadd.s32 %s15, %s16
        %p149 = scmp.lt.s32.totalorder %s148, 0
        %s150 = scalar_select %p149, %s148, 0
        %s151 = smul.u32 8, %s150
        %s152 = ssub.s32 1, %s151
        %p153 = scmp.lt.s32.totalorder %s151, 0
        %s154 = scalar_select %p153, %s151, 0
        %s155 = scalar_lea.vmem %s1, %s154
        %s156 = sadd.s32 %s15, %s16
        %p157 = scmp.lt.s32.totalorder %s156, 0
        %s158 = scalar_select %p157, %s156, 0
        %s159 = smul.u32 8, %s158
        %s160 = ssub.s32 1, %s159
      $region24: #{smooth_l1_loss.1} parent=15 // pred_fallthru
        _
    $region16: #{smooth_l1_loss.1} parent=5 // pred_fallthru
      _
    %p161 = scmp.le.s32.totalorder 1, %s8
    %p162 = scmp.lt.s32.totalorder %s8, 3
    %p163 = pnand %p161, %p162
    %p164 = pneg %p163
    // Predicated region
    $region25: #{smooth_l1_loss.1} parent=5 // pred_check
      _
    $region26: #{smooth_l1_loss.1} parent=5 // pred_check_branch
      %166 = sbr.rel (%p163) target = $region28
    $region27: #{smooth_l1_loss.1} parent=5 // pred_region
      %s167 = ssub.s32 %s8, 1
      %s168 = sadd.s32 %s17, %s18
      %p169 = scmp.lt.s32.totalorder %s168, 0
      %s170 = scalar_select %p169, %s168, 0
      %s171 = smul.u32 8, %s170
      %s172 = ssub.s32 1, %s171
      %p173 = scmp.lt.s32.totalorder %s171, 0
      %s174 = scalar_select %p173, %s171, 0
      %s175 = scalar_lea.vmem %s0, %s174
      %p176 = pneg %p52
      %p177 = pneg %p49
      %s178 = sadd.s32 %s17, %s18
      %p179 = scmp.lt.s32.totalorder %s178, 0
      %s180 = scalar_select %p179, %s178, 0
      %s181 = smul.u32 8, %s180
      %s182 = ssub.s32 1, %s181
      %p183 = scmp.lt.s32.totalorder %s181, 0
      %s184 = scalar_select %p183, %s181, 0
      %s185 = scalar_lea.vmem %s1, %s184
      %p186 = pneg %p84
      %p187 = pneg %p81
      %p188 = pneg %p110
      %p189 = pneg %p107
      %p190 = scmp.lt.s32.totalorder %s17, 1
      %s191 = scalar_select %p190, %s17, 1
      %s192 = smul.addr %s191, 8
      %s193 = scalar_lea.vmem %s2, %s192
      %s194 = sadd.s32 %s17, %s18
      %p195 = scmp.lt.s32.totalorder %s194, 0
      %s196 = scalar_select %p195, %s194, 0
      %s197 = smul.u32 8, %s196
      %s198 = ssub.s32 1, %s197
      %p199 = scmp.lt.s32.totalorder %s197, 0
      %s200 = scalar_select %p199, %s197, 0
      %s201 = scalar_lea.vmem %s0, %s200
      %s202 = sadd.s32 %s17, %s18
      %p203 = scmp.lt.s32.totalorder %s202, 0
      %s204 = scalar_select %p203, %s202, 0
      %s205 = smul.u32 8, %s204
      %s206 = ssub.s32 1, %s205
      %s207 = sadd.s32 %s17, %s18
      %p208 = scmp.lt.s32.totalorder %s207, 0
      %s209 = scalar_select %p208, %s207, 0
      %s210 = smul.u32 8, %s209
      %s211 = ssub.s32 1, %s210
      %p212 = scmp.lt.s32.totalorder %s210, 0
      %s213 = scalar_select %p212, %s210, 0
      %s214 = scalar_lea.vmem %s1, %s213
      %s215 = sadd.s32 %s17, %s18
      %p216 = scmp.lt.s32.totalorder %s215, 0
      %s217 = scalar_select %p216, %s215, 0
      %s218 = smul.u32 8, %s217
      %s219 = ssub.s32 1, %s218
      %p220 = scmp.lt.s32.totalorder %s17, 1
      %s221 = scalar_select %p220, %s17, 1
      %s222 = smul.addr %s221, 8
      %s223 = scalar_lea.vmem %s2, %s222
      %p224 = scmp.eq.s32.totalorder %s18, 0
      // Predicated region
      $region29: #{smooth_l1_loss.1} parent=27 // pred_check
        %p225 = pneg %p224
      $region30: #{smooth_l1_loss.1} parent=27 // pred_check_branch
        %227 = sbr.rel (%p225) target = $region32
      $region31: #{smooth_l1_loss.1} parent=27 // pred_region
        %228 = vst [vmem:[#allocation2] sm:$0xff] 0.0
      $region32: #{smooth_l1_loss.1} parent=27 // pred_fallthru
        _
      %v229 = vld [vmem:[%s201] sm:$0xff]
      %v230 = vld [vmem:[%s214] sm:$0xff]
      %v231 = vsub.f32 %v229, %v230
      %v232 = vand.u32 2147483647, %v231
      %s233 = sadd.s32 %s17, %s18
      %v234 = vlaneseq
      %v235 = vshrl.u32 %v234, 7
      %s236 = smul.u32 %s233, 8
      %v237 = vstv %s236
      %v238 = vadd.s32 %v235, %v237
      %vm239 = vcmp.lt.s32.totalorder %v238, 1
      %v240 = vsel %vm239, %v232, 0.0
      %v241 = vld [vmem:[#allocation2] sm:$0xff]
      %v242 = vadd.f32 %v240, 0.0
      %v243 = vadd.f32 %v241, %v242
      %244 = vst [vmem:[#allocation2] sm:$0xff] %v243
      // Predicated region
      $region33: #{smooth_l1_loss.1} parent=27 // pred_check
        %p245 = pneg %p224
      $region34: #{smooth_l1_loss.1} parent=27 // pred_check_branch
        %247 = sbr.rel (%p245) target = $region36
      $region35: #{smooth_l1_loss.1} parent=27 // pred_region
        %v248 = vld [vmem:[#allocation2] sm:$0xff]
        %249 = vst [vmem:[%s223] sm:$0xff] %v248
      $region36: #{smooth_l1_loss.1} parent=27 // pred_fallthru
        _
      %p250 = scmp.lt.s32.totalorder %s17, 1
      %s251 = scalar_select %p250, %s17, 1
      %s252 = smul.addr %s251, 8
      %s253 = scalar_lea.vmem %s2, %s252
      // Predicated region
      $region37: #{smooth_l1_loss.1} parent=27 // pred_check
        %p254 = pneg %p107
      $region38: #{smooth_l1_loss.1} parent=27 // pred_check_branch
        %256 = sbr.rel (%p254) target = $region40
      $region39: #{smooth_l1_loss.1} parent=27 // pred_region
        _
      $region40: #{smooth_l1_loss.1} parent=27 // pred_fallthru
        _
    $region28: #{smooth_l1_loss.1} parent=5 // pred_fallthru
      _
    %p257 = scmp.le.s32.totalorder 2, %s8
    // Predicated region
    $region41: #{smooth_l1_loss.1} parent=5 // pred_check
      %p258 = pneg %p257
    $region42: #{smooth_l1_loss.1} parent=5 // pred_check_branch
      %260 = sbr.rel (%p258) target = $region44
    $region43: #{smooth_l1_loss.1} parent=5 // pred_region
      %s261 = ssub.s32 %s8, 2
      // Predicated region
      $region45: #{smooth_l1_loss.1} parent=43 // pred_check
        %p262 = pneg %p113
      $region46: #{smooth_l1_loss.1} parent=43 // pred_check_branch
        %264 = sbr.rel (%p262) target = $region48
      $region47: #{smooth_l1_loss.1} parent=43 // pred_region
        %p265 = scmp.lt.s32.totalorder %s19, 1
        %s266 = scalar_select %p265, %s19, 1
        %s267 = smul.addr %s266, 8
        %s268 = scalar_lea.vmem %s2, %s267
      $region48: #{smooth_l1_loss.1} parent=43 // pred_fallthru
        _
    $region44: #{smooth_l1_loss.1} parent=5 // pred_fallthru
      _
  $region6: #{smooth_l1_loss.1} parent=0 // loop_footer
    %s12 = sadd.s32 1, %s8
  $region7: #{smooth_l1_loss.1} parent=0 // loop_footer_branch
    %7 = sbr.rel target = $region3
  $region8: #{smooth_l1_loss.1} parent=0 // loop_exit
    _

</llo_original>
